<compile_context>
chip_gen: v7x
topology: tpu7x:2x2x1
jax: 0.10.0
libtpu: 0.0.40
codegen_flags: <defaults>
</compile_context>

<pallas_src>
import functools

import jax
import jax.numpy as jnp
from jax.experimental import pallas as pl
from jax.experimental.pallas import tpu as pltpu

HIDDEN = 256


def critic_kernel(x_ref, w1_ref, b1_ref, w2_ref, b2_ref, w3_ref, o_ref):
    # x_ref: (B_TILE, S) bf16, streamed per grid step; weights/biases VMEM-resident.
    # o_ref: (1, B_TILE) f32 lane-dense output row.
    x = x_ref[...]                                                       # bf16
    # Layer 1: (bt, S) @ (S, 256) on the MXU (K=S pads to a full MXU K-tile; see header).
    h1 = jnp.dot(x, w1_ref[...], preferred_element_type=jnp.float32)    # MXU, f32 acc
    h1 = jnp.maximum(h1 + b1_ref[...], 0.0)                             # ReLU (VPU, f32)
    # Layer 2: (bt, 256) @ (256, 256) on the MXU, bf16 operands, f32 accumulation.
    h2 = jnp.dot(h1.astype(jnp.bfloat16), w2_ref[...],
                 preferred_element_type=jnp.float32)                    # MXU, f32 acc
    h2 = jnp.maximum(h2 + b2_ref[...], 0.0)                             # ReLU (VPU, f32)
    # Layer 3 (256 -> 1): broadcast-multiply (VPU) + lane reduction (XLU) instead of a
    # degenerate N=1 MXU matmul; written as a lane-dense (1, B_TILE) row.
    v = jnp.sum(h2 * w3_ref[...], axis=-1)                              # (B_TILE,) f32
    o_ref[...] = v[None, :]                                             # (1, B_TILE)


def _round_up(x, m):
    return ((x + m - 1) // m) * m


def _pick_batch_tile(batch, b_tile):
    """Pick the per-grid-step row tile (static Python ints).

    Small batches run as a single tile. Larger batches get an even number of
    roughly equal, 128-row-aligned tiles so v7x's two TensorCores (the grid axis
    is "parallel") both receive balanced work, capped at b_tile rows per tile.
    """
    if batch <= min(256, b_tile):
        return batch
    pairs = -(-batch // (2 * b_tile))          # ceil: number of tile pairs
    bt = -(-batch // (2 * pairs))              # ceil: balanced tile size
    bt = min(b_tile, _round_up(bt, 128))
    return max(8, bt)


@functools.partial(jax.jit, static_argnames=("b_tile", "single_buffer_weights"))
def critic_forward(state, params, *, b_tile=4096, single_buffer_weights=True):
    """state: (B, state_dim) float32. Returns (B,) float32 value per state."""
    w1, b1, w2, b2, w3, b3 = params
    batch, state_dim = state.shape

    bt = _pick_batch_tile(batch, b_tile)
    num_tiles = pl.cdiv(batch, bt)

    # bf16 MXU operands (f32 accumulation in-kernel); biases / final layer stay f32.
    x_bf16 = state.astype(jnp.bfloat16)
    w1_bf16 = w1.astype(jnp.bfloat16)
    w2_bf16 = w2.astype(jnp.bfloat16)
    w3_row = w3.reshape(1, HIDDEN).astype(jnp.float32)   # (256,1) -> (1,256) for VPU layer 3

    flops = 2 * batch * (state_dim * HIDDEN + HIDDEN * HIDDEN + HIDDEN)
    bytes_accessed = (2 * batch * state_dim                         # bf16 state stream
                      + 4 * batch                                   # f32 output
                      + 2 * (state_dim * HIDDEN + HIDDEN * HIDDEN)  # bf16 weights
                      + 4 * (3 * HIDDEN))                           # f32 biases + w3 row

    def resident(shape):
        # Constant index_map: fetched once, stays VMEM-resident across the whole grid.
        # Single buffer requested because these blocks never change between steps.
        if single_buffer_weights:
            return pl.BlockSpec(shape, lambda i: (0, 0), pipeline_mode=pl.Buffered(1))
        return pl.BlockSpec(shape, lambda i: (0, 0))

    out = pl.pallas_call(
        critic_kernel,
        out_shape=jax.ShapeDtypeStruct((num_tiles, bt), jnp.float32),
        grid=(num_tiles,),
        in_specs=[
            pl.BlockSpec((bt, state_dim), lambda i: (i, 0)),  # state: streamed per tile
            resident((state_dim, HIDDEN)),                    # w1 (bf16)
            resident((1, HIDDEN)),                            # b1 (f32)
            resident((HIDDEN, HIDDEN)),                       # w2 (bf16)
            resident((1, HIDDEN)),                            # b2 (f32)
            resident((1, HIDDEN)),                            # w3 row (f32)
        ],
        out_specs=pl.BlockSpec((1, bt), lambda i: (i, 0)),    # lane-dense output slab
        compiler_params=pltpu.CompilerParams(
            dimension_semantics=("parallel",),                # megacore split on v7x
            vmem_limit_bytes=32 * 1024 * 1024,                # raise v5e's 16 MiB default
        ),
        cost_estimate=pl.CostEstimate(
            flops=flops, transcendentals=0, bytes_accessed=bytes_accessed),
    )(x_bf16, w1_bf16, b1, w2_bf16, b2, w3_row)

    # Flatten the (num_tiles, bt) slab back to (B,). Garbage rows from a ragged last
    # tile (batch % bt != 0) land past index B and are sliced off. b3 (one scalar) is
    # added here instead of occupying a (1,1) VMEM tile in the kernel.
    return out.reshape(-1)[:batch] + b3.reshape(())


def init_params(key, state_dim):
    """Deterministic init mimicking PyTorch nn.Linear default U(-1/sqrt(fan_in), +)."""
    def linear(key, fan_in, fan_out):
        kw, kb = jax.random.split(key)
        bound = 1.0 / jnp.sqrt(jnp.float32(fan_in))
        w = jax.random.uniform(kw, (fan_in, fan_out), jnp.float32, -bound, bound)
        b = jax.random.uniform(kb, (1, fan_out), jnp.float32, -bound, bound)
        return w, b

    k1, k2, k3 = jax.random.split(key, 3)
    w1, b1 = linear(k1, state_dim, HIDDEN)
    w2, b2 = linear(k2, HIDDEN, HIDDEN)
    w3, b3 = linear(k3, HIDDEN, 1)
    return (w1, b1, w2, b2, w3, b3)


def critic_reference(state, params):
    w1, b1, w2, b2, w3, b3 = params
    h1 = jnp.maximum(state @ w1 + b1, 0.0)
    h2 = jnp.maximum(h1 @ w2 + b2, 0.0)
    return (h2 @ w3 + b3)[:, 0]


if __name__ == "__main__":
    key = jax.random.PRNGKey(0)
    k_params, k_state, k_state2 = jax.random.split(key, 3)

    batch = 8
    state_dim = 17  # Walker2d observation dimension

    params = init_params(k_params, state_dim)
    state = jax.random.normal(k_state, (batch, state_dim), jnp.float32)
    ref = critic_reference(state, params)

    # Single-tile path. Prefer single-buffered resident weights (pl.Buffered(1)); fall
    # back to default double-buffering if this JAX/Mosaic build rejects pipeline_mode
    # on a top-level pallas_call BlockSpec (it is only a ~300 KB VMEM micro-opt).
    single_buf = True
    try:
        value = jax.block_until_ready(
            critic_forward(state, params, single_buffer_weights=True))
    except Exception:
        single_buf = False
        value = jax.block_until_ready(
            critic_forward(state, params, single_buffer_weights=False))

    assert value.shape == (batch,)
    # bf16 matmul operands (f32 accumulation): ~1e-3 relative deviation vs f32 reference.
    assert jnp.allclose(value, ref, atol=3e-2, rtol=3e-2), (value, ref)

    # Multi-tile path with a ragged last tile (exercises the batch grid, resident
    # weights and the lane-dense output slab) at a small size: b_tile=16 -> 3 tiles.
    state_big = jax.random.normal(k_state2, (40, state_dim), jnp.float32)
    value_big = jax.block_until_ready(
        critic_forward(state_big, params, b_tile=16, single_buffer_weights=single_buf))
    ref_big = critic_reference(state_big, params)
    assert value_big.shape == (40,)
    assert jnp.allclose(value_big, ref_big, atol=3e-2, rtol=3e-2), (value_big, ref_big)

    print("KERNEL_OK")
</pallas_src>

<mosaic_0001>
module attributes {stable_mosaic.version = 11 : i64} {
  func.func @critic_kernel(%arg0: i32, %arg1: memref<8x17xbf16, #tpu.memory_space<vmem>>, %arg2: memref<17x256xbf16, #tpu.memory_space<vmem>>, %arg3: memref<1x256xf32, #tpu.memory_space<vmem>>, %arg4: memref<256x256xbf16, #tpu.memory_space<vmem>>, %arg5: memref<1x256xf32, #tpu.memory_space<vmem>>, %arg6: memref<1x256xf32, #tpu.memory_space<vmem>>, %arg7: memref<1x8xf32, #tpu.memory_space<vmem>>) attributes {dimension_semantics = [#tpu.dimension_semantics<parallel>], iteration_bounds = array<i64: 1>, scalar_prefetch = 0 : i64, scratch_operands = 0 : i64, tpu.core_type = #tpu.core_type<tc>, window_params = [{transform_indices = @transform_0, window_bounds = array<i64: 8, 17>}, {pipeline_mode = #tpu.pipeline_mode<synchronous>, transform_indices = @transform_1, window_bounds = array<i64: 17, 256>}, {pipeline_mode = #tpu.pipeline_mode<synchronous>, transform_indices = @transform_2, window_bounds = array<i64: 1, 256>}, {pipeline_mode = #tpu.pipeline_mode<synchronous>, transform_indices = @transform_3, window_bounds = array<i64: 256, 256>}, {pipeline_mode = #tpu.pipeline_mode<synchronous>, transform_indices = @transform_4, window_bounds = array<i64: 1, 256>}, {pipeline_mode = #tpu.pipeline_mode<synchronous>, transform_indices = @transform_5, window_bounds = array<i64: 1, 256>}, {transform_indices = @transform_6, window_bounds = array<i64: 1, 8>}]} {
    %c0 = arith.constant 0 : index
    %c0_0 = arith.constant 0 : index
    %0 = vector.load %arg1[%c0, %c0_0] : memref<8x17xbf16, #tpu.memory_space<vmem>>, vector<8x17xbf16>
    %c0_1 = arith.constant 0 : index
    %c0_2 = arith.constant 0 : index
    %1 = vector.load %arg2[%c0_1, %c0_2] : memref<17x256xbf16, #tpu.memory_space<vmem>>, vector<17x256xbf16>
    %cst = arith.constant dense<0.000000e+00> : vector<8x256xf32>
    %2 = tpu.matmul %0, %1, %cst {dimension_numbers = #tpu.dot_dimension_numbers<[1], [0], [0], [1], [0, 0, 1, 1], [], []>} : vector<8x17xbf16>, vector<17x256xbf16>, vector<8x256xf32> -> vector<8x256xf32>
    %c0_3 = arith.constant 0 : index
    %c0_4 = arith.constant 0 : index
    %3 = vector.load %arg3[%c0_3, %c0_4] : memref<1x256xf32, #tpu.memory_space<vmem>>, vector<1x256xf32>
    %4 = vector.broadcast %3 : vector<1x256xf32> to vector<8x256xf32>
    %5 = arith.addf %2, %4 : vector<8x256xf32>
    %cst_5 = arith.constant 0.000000e+00 : f32
    %6 = vector.broadcast %cst_5 : f32 to vector<8x256xf32>
    %7 = arith.maximumf %5, %6 : vector<8x256xf32>
    %8 = arith.truncf %7 : vector<8x256xf32> to vector<8x256xbf16>
    %c0_6 = arith.constant 0 : index
    %c0_7 = arith.constant 0 : index
    %9 = vector.load %arg4[%c0_6, %c0_7] : memref<256x256xbf16, #tpu.memory_space<vmem>>, vector<256x256xbf16>
    %cst_8 = arith.constant dense<0.000000e+00> : vector<8x256xf32>
    %10 = tpu.matmul %8, %9, %cst_8 {dimension_numbers = #tpu.dot_dimension_numbers<[1], [0], [0], [1], [0, 0, 1, 1], [], []>} : vector<8x256xbf16>, vector<256x256xbf16>, vector<8x256xf32> -> vector<8x256xf32>
    %c0_9 = arith.constant 0 : index
    %c0_10 = arith.constant 0 : index
    %11 = vector.load %arg5[%c0_9, %c0_10] : memref<1x256xf32, #tpu.memory_space<vmem>>, vector<1x256xf32>
    %12 = vector.broadcast %11 : vector<1x256xf32> to vector<8x256xf32>
    %13 = arith.addf %10, %12 : vector<8x256xf32>
    %cst_11 = arith.constant 0.000000e+00 : f32
    %14 = vector.broadcast %cst_11 : f32 to vector<8x256xf32>
    %15 = arith.maximumf %13, %14 : vector<8x256xf32>
    %c0_12 = arith.constant 0 : index
    %c0_13 = arith.constant 0 : index
    %16 = vector.load %arg6[%c0_12, %c0_13] : memref<1x256xf32, #tpu.memory_space<vmem>>, vector<1x256xf32>
    %17 = vector.broadcast %16 : vector<1x256xf32> to vector<8x256xf32>
    %18 = arith.mulf %15, %17 : vector<8x256xf32>
    %cst_14 = arith.constant dense<0.000000e+00> : vector<8xf32>
    %19 = vector.multi_reduction <add>, %18, %cst_14 [1] : vector<8x256xf32> to vector<8xf32>
    %20 = vector.shape_cast %19 : vector<8xf32> to vector<1x8xf32>
    %c0_15 = arith.constant 0 : index
    %c0_16 = arith.constant 0 : index
    %21 = vector.load %arg7[%c0_15, %c0_16] : memref<1x8xf32, #tpu.memory_space<vmem>>, vector<1x8xf32>
    tpu.vector_store %arg7[%c0_15, %c0_16], %20 {strides = array<i32>} : memref<1x8xf32, #tpu.memory_space<vmem>>, vector<1x8xf32>,
    return
  }
  func.func @transform_0(%arg0: i32) -> (i32, i32) {
    %c0_i32 = arith.constant 0 : i32
    %c0_i32_0 = arith.constant 0 : i32
    return %arg0, %c0_i32 : i32, i32
  }
  func.func @transform_1(%arg0: i32) -> (i32, i32) {
    %c0_i32 = arith.constant 0 : i32
    %c0_i32_0 = arith.constant 0 : i32
    %c0_i32_1 = arith.constant 0 : i32
    return %c0_i32, %c0_i32_0 : i32, i32
  }
  func.func @transform_2(%arg0: i32) -> (i32, i32) {
    %c0_i32 = arith.constant 0 : i32
    %c0_i32_0 = arith.constant 0 : i32
    %c0_i32_1 = arith.constant 0 : i32
    return %c0_i32, %c0_i32_0 : i32, i32
  }
  func.func @transform_3(%arg0: i32) -> (i32, i32) {
    %c0_i32 = arith.constant 0 : i32
    %c0_i32_0 = arith.constant 0 : i32
    %c0_i32_1 = arith.constant 0 : i32
    return %c0_i32, %c0_i32_0 : i32, i32
  }
  func.func @transform_4(%arg0: i32) -> (i32, i32) {
    %c0_i32 = arith.constant 0 : i32
    %c0_i32_0 = arith.constant 0 : i32
    %c0_i32_1 = arith.constant 0 : i32
    return %c0_i32, %c0_i32_0 : i32, i32
  }
  func.func @transform_5(%arg0: i32) -> (i32, i32) {
    %c0_i32 = arith.constant 0 : i32
    %c0_i32_0 = arith.constant 0 : i32
    %c0_i32_1 = arith.constant 0 : i32
    return %c0_i32, %c0_i32_0 : i32, i32
  }
  func.func @transform_6(%arg0: i32) -> (i32, i32) {
    %c0_i32 = arith.constant 0 : i32
    %c0_i32_0 = arith.constant 0 : i32
    return %arg0, %c0_i32 : i32, i32
  }
}

module attributes {stable_mosaic.version = 11 : i64} {
  func.func @critic_kernel(%arg0: i32, %arg1: memref<8x17xbf16, #tpu.memory_space<vmem>>, %arg2: memref<17x256xbf16, #tpu.memory_space<vmem>>, %arg3: memref<1x256xf32, #tpu.memory_space<vmem>>, %arg4: memref<256x256xbf16, #tpu.memory_space<vmem>>, %arg5: memref<1x256xf32, #tpu.memory_space<vmem>>, %arg6: memref<1x256xf32, #tpu.memory_space<vmem>>, %arg7: memref<1x8xf32, #tpu.memory_space<vmem>>) attributes {dimension_semantics = [#tpu.dimension_semantics<parallel>], iteration_bounds = array<i64: 1>, scalar_prefetch = 0 : i64, scratch_operands = 0 : i64, tpu.core_type = #tpu.core_type<tc>, window_params = [{transform_indices = @transform_0, window_bounds = array<i64: 8, 17>}, {pipeline_mode = #tpu.pipeline_mode<synchronous>, transform_indices = @transform_1, window_bounds = array<i64: 17, 256>}, {pipeline_mode = #tpu.pipeline_mode<synchronous>, transform_indices = @transform_2, window_bounds = array<i64: 1, 256>}, {pipeline_mode = #tpu.pipeline_mode<synchronous>, transform_indices = @transform_3, window_bounds = array<i64: 256, 256>}, {pipeline_mode = #tpu.pipeline_mode<synchronous>, transform_indices = @transform_4, window_bounds = array<i64: 1, 256>}, {pipeline_mode = #tpu.pipeline_mode<synchronous>, transform_indices = @transform_5, window_bounds = array<i64: 1, 256>}, {transform_indices = @transform_6, window_bounds = array<i64: 1, 8>}]} {
    %c0 = arith.constant 0 : index
    %c0_0 = arith.constant 0 : index
    %0 = vector.load %arg1[%c0, %c0_0] : memref<8x17xbf16, #tpu.memory_space<vmem>>, vector<8x17xbf16>
    %c0_1 = arith.constant 0 : index
    %c0_2 = arith.constant 0 : index
    %1 = vector.load %arg2[%c0_1, %c0_2] : memref<17x256xbf16, #tpu.memory_space<vmem>>, vector<17x256xbf16>
    %cst = arith.constant dense<0.000000e+00> : vector<8x256xf32>
    %2 = tpu.matmul %0, %1, %cst {dimension_numbers = #tpu.dot_dimension_numbers<[1], [0], [0], [1], [0, 0, 1, 1], [], []>} : vector<8x17xbf16>, vector<17x256xbf16>, vector<8x256xf32> -> vector<8x256xf32>
    %c0_3 = arith.constant 0 : index
    %c0_4 = arith.constant 0 : index
    %3 = vector.load %arg3[%c0_3, %c0_4] : memref<1x256xf32, #tpu.memory_space<vmem>>, vector<1x256xf32>
    %4 = vector.broadcast %3 : vector<1x256xf32> to vector<8x256xf32>
    %5 = arith.addf %2, %4 : vector<8x256xf32>
    %cst_5 = arith.constant 0.000000e+00 : f32
    %6 = vector.broadcast %cst_5 : f32 to vector<8x256xf32>
    %7 = arith.maximumf %5, %6 : vector<8x256xf32>
    %8 = arith.truncf %7 : vector<8x256xf32> to vector<8x256xbf16>
    %c0_6 = arith.constant 0 : index
    %c0_7 = arith.constant 0 : index
    %9 = vector.load %arg4[%c0_6, %c0_7] : memref<256x256xbf16, #tpu.memory_space<vmem>>, vector<256x256xbf16>
    %cst_8 = arith.constant dense<0.000000e+00> : vector<8x256xf32>
    %10 = tpu.matmul %8, %9, %cst_8 {dimension_numbers = #tpu.dot_dimension_numbers<[1], [0], [0], [1], [0, 0, 1, 1], [], []>} : vector<8x256xbf16>, vector<256x256xbf16>, vector<8x256xf32> -> vector<8x256xf32>
    %c0_9 = arith.constant 0 : index
    %c0_10 = arith.constant 0 : index
    %11 = vector.load %arg5[%c0_9, %c0_10] : memref<1x256xf32, #tpu.memory_space<vmem>>, vector<1x256xf32>
    %12 = vector.broadcast %11 : vector<1x256xf32> to vector<8x256xf32>
    %13 = arith.addf %10, %12 : vector<8x256xf32>
    %cst_11 = arith.constant 0.000000e+00 : f32
    %14 = vector.broadcast %cst_11 : f32 to vector<8x256xf32>
    %15 = arith.maximumf %13, %14 : vector<8x256xf32>
    %c0_12 = arith.constant 0 : index
    %c0_13 = arith.constant 0 : index
    %16 = vector.load %arg6[%c0_12, %c0_13] : memref<1x256xf32, #tpu.memory_space<vmem>>, vector<1x256xf32>
    %17 = vector.broadcast %16 : vector<1x256xf32> to vector<8x256xf32>
    %18 = arith.mulf %15, %17 : vector<8x256xf32>
    %cst_14 = arith.constant dense<0.000000e+00> : vector<8xf32>
    %19 = vector.multi_reduction <add>, %18, %cst_14 [1] : vector<8x256xf32> to vector<8xf32>
    %20 = vector.shape_cast %19 : vector<8xf32> to vector<1x8xf32>
    %c0_15 = arith.constant 0 : index
    %c0_16 = arith.constant 0 : index
    %21 = vector.load %arg7[%c0_15, %c0_16] : memref<1x8xf32, #tpu.memory_space<vmem>>, vector<1x8xf32>
    tpu.vector_store %arg7[%c0_15, %c0_16], %20 {strides = array<i32>} : memref<1x8xf32, #tpu.memory_space<vmem>>, vector<1x8xf32>,
    return
  }
  func.func @transform_0(%arg0: i32) -> (i32, i32) {
    %c0_i32 = arith.constant 0 : i32
    %c0_i32_0 = arith.constant 0 : i32
    return %arg0, %c0_i32 : i32, i32
  }
  func.func @transform_1(%arg0: i32) -> (i32, i32) {
    %c0_i32 = arith.constant 0 : i32
    %c0_i32_0 = arith.constant 0 : i32
    %c0_i32_1 = arith.constant 0 : i32
    return %c0_i32, %c0_i32_0 : i32, i32
  }
  func.func @transform_2(%arg0: i32) -> (i32, i32) {
    %c0_i32 = arith.constant 0 : i32
    %c0_i32_0 = arith.constant 0 : i32
    %c0_i32_1 = arith.constant 0 : i32
    return %c0_i32, %c0_i32_0 : i32, i32
  }
  func.func @transform_3(%arg0: i32) -> (i32, i32) {
    %c0_i32 = arith.constant 0 : i32
    %c0_i32_0 = arith.constant 0 : i32
    %c0_i32_1 = arith.constant 0 : i32
    return %c0_i32, %c0_i32_0 : i32, i32
  }
  func.func @transform_4(%arg0: i32) -> (i32, i32) {
    %c0_i32 = arith.constant 0 : i32
    %c0_i32_0 = arith.constant 0 : i32
    %c0_i32_1 = arith.constant 0 : i32
    return %c0_i32, %c0_i32_0 : i32, i32
  }
  func.func @transform_5(%arg0: i32) -> (i32, i32) {
    %c0_i32 = arith.constant 0 : i32
    %c0_i32_0 = arith.constant 0 : i32
    %c0_i32_1 = arith.constant 0 : i32
    return %c0_i32, %c0_i32_0 : i32, i32
  }
  func.func @transform_6(%arg0: i32) -> (i32, i32) {
    %c0_i32 = arith.constant 0 : i32
    %c0_i32_0 = arith.constant 0 : i32
    return %arg0, %c0_i32 : i32, i32
  }
}

</mosaic_0001>

<llo_original>
// kernel: critic_forward.1
$region0: #{critic_forward.1}
  #allocation0 [shape = 'u32[]', space=smem, size = 0x4, offset = 0x4, fixed_abs, tag = 'smem constant byte address 0x4 - core index']
  #allocation1 [shape = 'u32[144,128]{1,0:T(1,128)}', space=vmem, size = 0x12000, scoped, tag = 'internal scratch']
  %s0 = inlined_call_operand.vmem [shape: bf16[8,17], index: 0, kind: input, shape index: {}]
  %s1 = inlined_call_operand.vmem [shape: bf16[17,256], index: 1, kind: input, shape index: {}]
  %s2 = inlined_call_operand.vmem [shape: f32[1,256], index: 2, kind: input, shape index: {}]
  %s3 = inlined_call_operand.vmem [shape: bf16[256,256], index: 3, kind: input, shape index: {}]
  %s4 = inlined_call_operand.vmem [shape: f32[1,256], index: 4, kind: input, shape index: {}]
  %s5 = inlined_call_operand.vmem [shape: f32[1,256], index: 5, kind: input, shape index: {}]
  %s6 = inlined_call_operand.vmem [shape: f32[1,8], index: 6, kind: output, shape index: {}]
  %s7 = sld [smem:[#allocation0]]
  $region34: #{critic_forward.1} parent=0
    _
  %s9 = ssub.s32 1, %s7
  %s10 = scalar_select 0, %s9, %s7
  // Predicated region
  $region2: #{critic_forward.1} parent=0 // pred_check
    _
  $region3: #{critic_forward.1} parent=0 // pred_check_branch
    %12 = sbr.rel (0) target = $region5
  $region4: #{critic_forward.1} parent=0 // pred_region
    _
  $region5: #{critic_forward.1} parent=0 // pred_fallthru
    _
  // Predicated region
  $region6: #{critic_forward.1} parent=0 // pred_check
    _
  $region7: #{critic_forward.1} parent=0 // pred_check_branch
    %14 = sbr.rel (0) target = $region9
  $region8: #{critic_forward.1} parent=0 // pred_region
    _
  $region9: #{critic_forward.1} parent=0 // pred_fallthru
    _
  // Predicated region
  $region10: #{critic_forward.1} parent=0 // pred_check
    _
  $region11: #{critic_forward.1} parent=0 // pred_check_branch
    %16 = sbr.rel (0) target = $region13
  $region12: #{critic_forward.1} parent=0 // pred_region
    _
  $region13: #{critic_forward.1} parent=0 // pred_fallthru
    _
  // Predicated region
  $region14: #{critic_forward.1} parent=0 // pred_check
    _
  $region15: #{critic_forward.1} parent=0 // pred_check_branch
    %18 = sbr.rel (0) target = $region17
  $region16: #{critic_forward.1} parent=0 // pred_region
    _
  $region17: #{critic_forward.1} parent=0 // pred_fallthru
    _
  // Predicated region
  $region18: #{critic_forward.1} parent=0 // pred_check
    _
  $region19: #{critic_forward.1} parent=0 // pred_check_branch
    %20 = sbr.rel (0) target = $region21
  $region20: #{critic_forward.1} parent=0 // pred_region
    _
  $region21: #{critic_forward.1} parent=0 // pred_fallthru
    _
  // Predicated region
  $region22: #{critic_forward.1} parent=0 // pred_check
    _
  $region23: #{critic_forward.1} parent=0 // pred_check_branch
    %22 = sbr.rel (0) target = $region25
  $region24: #{critic_forward.1} parent=0 // pred_region
    _
  $region25: #{critic_forward.1} parent=0 // pred_fallthru
    _
  %v24 = vld [vmem:[%s0] sm:$0xf]
  %v25 = vld [vmem:[%s1] sm:$0xff]
  %v26 = vld [vmem:[%s1 + $0x8] sm:$0xff]
  %v27 = vld [vmem:[%s1 + $0x10] sm:$0x11]
  %v28 = vld [vmem:[%s2] sm:$0x3]
  %v30 = vlaneseq
  %v31 = vshrl.u32 %v30, 7
  %v32 = vsub.s32 0, %v31
  %v33 = vrot.slane %v28, %v32
  %v34 = vlaneseq
  %v35 = vshrl.u32 %v34, 7
  %v36 = vsub.s32 1, %v35
  %v37 = vrot.slane %v28, %v36
  %v43 = vunpack.c.l.b16 %v25
  %v44 = vunpack.c.h.b16 %v25
  %v45 = vunpack.c.l.b16 %v26
  %v46 = vunpack.c.h.b16 %v26
  %v47 = vunpack.c.l.b16 %v27
  %v48 = vunpack.c.h.b16 %v27
  %v49 = vpack.c.b16 %v45, %v43
  %v50 = vpack.c.b16 %v46, %v44
  %v51 = vpack.c.b16 %v47, %v47
  %v52 = vpack.c.b16 %v48, %v48
  %vm55 = vcmask 138240
  %v57 = vsel %vm55, %v24, 0
  %vm59 = vcmask 1040384
  %v60 = vsel 0, 4294967295, 65535
  %v61 = vsel %vm59, %v60, 0
  %v63 = vand.u32 %v51, %v61
  %v66 = vand.u32 %v52, %v61
  %68 = vmatprep.subr.bf16.mxu0 %v50
  %69 = vmatpush1.bf16.msra.mxu0 %v49
  %70 = vmatprep.subr.bf16.mxu0 %v66
  %71 = vmatpush1.bf16.msra.mxu0 %v63
  %72 = vmatprep.subr.bf16.mxu0 0
  %73 = vmatpush1.bf16.msra.mxu0 0
  %74 = vmatprep.subr.bf16.mxu0 0
  %75 = vmatpush1.bf16.msra.mxu0 0
  %76 = vmatprep.subr.bf16.mxu0 0
  %77 = vmatpush1.bf16.msra.mxu0 0
  %78 = vmatprep.subr.bf16.mxu0 0
  %79 = vmatpush1.bf16.msra.mxu0 0
  %80 = vmatprep.subr.bf16.mxu0 0
  %81 = vmatpush1.bf16.msra.mxu0 0
  %82 = vmatprep.subr.bf16.mxu0 0
  %83 = vmatpush1.bf16.msra.mxu0 0
  %84 = vmatprep.subr.bf16.mxu0 0
  %85 = vmatpush1.bf16.msra.mxu0 0
  %86 = vmatprep.subr.bf16.mxu0 0
  %87 = vmatpush1.bf16.msra.mxu0 0
  %88 = vmatprep.subr.bf16.mxu0 0
  %89 = vmatpush1.bf16.msra.mxu0 0
  %90 = vmatprep.subr.bf16.mxu0 0
  %91 = vmatpush1.bf16.msra.mxu0 0
  %92 = vmatprep.subr.bf16.mxu0 0
  %93 = vmatpush1.bf16.msra.mxu0 0
  %94 = vmatprep.subr.bf16.mxu0 0
  %95 = vmatpush1.bf16.msra.mxu0 0
  %96 = vmatprep.subr.bf16.mxu0 0
  %97 = vmatpush1.bf16.msra.mxu0 0
  %98 = vmatprep.subr.bf16.mxu0 0
  %99 = vmatpush1.bf16.msra.mxu0 0
  %100 = vmatprep.mubr.bf16.mxu0 0
  %101 = vmatmul.mubr.bf16.gmra.mrb[0].mxu0 %v57
  %v102 = vpop.f32.mrb[0].mxu0
  %v103 = vadd.f32 %v33, %v102
  %v104 = vpop.f32.mrb[0].mxu0
  %v105 = vadd.f32 %v37, %v104
  %v106 = vpop.f32.mrb[0].mxu0
  %v107 = vpop.f32.mrb[0].mxu0
  %108 = vdwg.mxu0
  %v109 = vmax.f32 %v103, 0.0
  %v110 = vmax.f32 %v105, 0.0
  %v111 = vpack.c.bf16 %v109, %v109
  %v112 = vpack.c.bf16 %v110, %v110
  %v113 = vld [vmem:[%s3] sm:$0xff]
  %v114 = vld [vmem:[%s3 + $0x8] sm:$0xff]
  %v115 = vld [vmem:[%s3 + $0x10] sm:$0xff]
  %v116 = vld [vmem:[%s3 + $0x18] sm:$0xff]
  %v117 = vld [vmem:[%s3 + $0x20] sm:$0xff]
  %v118 = vld [vmem:[%s3 + $0x28] sm:$0xff]
  %v119 = vld [vmem:[%s3 + $0x30] sm:$0xff]
  %v120 = vld [vmem:[%s3 + $0x38] sm:$0xff]
  %v121 = vld [vmem:[%s3 + $0x40] sm:$0xff]
  %v122 = vld [vmem:[%s3 + $0x48] sm:$0xff]
  %v123 = vld [vmem:[%s3 + $0x50] sm:$0xff]
  %v124 = vld [vmem:[%s3 + $0x58] sm:$0xff]
  %v125 = vld [vmem:[%s3 + $0x60] sm:$0xff]
  %v126 = vld [vmem:[%s3 + $0x68] sm:$0xff]
  %v127 = vld [vmem:[%s3 + $0x70] sm:$0xff]
  %v128 = vld [vmem:[%s3 + $0x78] sm:$0xff]
  %v129 = vld [vmem:[%s3 + $0x80] sm:$0xff]
  %v130 = vld [vmem:[%s3 + $0x88] sm:$0xff]
  %v131 = vld [vmem:[%s3 + $0x90] sm:$0xff]
  %v132 = vld [vmem:[%s3 + $0x98] sm:$0xff]
  %v133 = vld [vmem:[%s3 + $0xa0] sm:$0xff]
  %v134 = vld [vmem:[%s3 + $0xa8] sm:$0xff]
  %v135 = vld [vmem:[%s3 + $0xb0] sm:$0xff]
  %v136 = vld [vmem:[%s3 + $0xb8] sm:$0xff]
  %v137 = vld [vmem:[%s3 + $0xc0] sm:$0xff]
  %v138 = vld [vmem:[%s3 + $0xc8] sm:$0xff]
  %v139 = vld [vmem:[%s3 + $0xd0] sm:$0xff]
  %v140 = vld [vmem:[%s3 + $0xd8] sm:$0xff]
  %v141 = vld [vmem:[%s3 + $0xe0] sm:$0xff]
  %v142 = vld [vmem:[%s3 + $0xe8] sm:$0xff]
  %v143 = vld [vmem:[%s3 + $0xf0] sm:$0xff]
  %v144 = vld [vmem:[%s3 + $0xf8] sm:$0xff]
  %v145 = vld [vmem:[%s4] sm:$0x3]
  %v147 = vlaneseq
  %v148 = vshrl.u32 %v147, 7
  %v149 = vsub.s32 0, %v148
  %v150 = vrot.slane %v145, %v149
  %v151 = vlaneseq
  %v152 = vshrl.u32 %v151, 7
  %v153 = vsub.s32 1, %v152
  %v154 = vrot.slane %v145, %v153
  %v189 = vunpack.c.l.b16 %v113
  %v190 = vunpack.c.h.b16 %v113
  %v191 = vunpack.c.l.b16 %v114
  %v192 = vunpack.c.h.b16 %v114
  %v193 = vunpack.c.l.b16 %v115
  %v194 = vunpack.c.h.b16 %v115
  %v195 = vunpack.c.l.b16 %v116
  %v196 = vunpack.c.h.b16 %v116
  %v197 = vunpack.c.l.b16 %v117
  %v198 = vunpack.c.h.b16 %v117
  %v199 = vunpack.c.l.b16 %v118
  %v200 = vunpack.c.h.b16 %v118
  %v201 = vunpack.c.l.b16 %v119
  %v202 = vunpack.c.h.b16 %v119
  %v203 = vunpack.c.l.b16 %v120
  %v204 = vunpack.c.h.b16 %v120
  %v205 = vunpack.c.l.b16 %v121
  %v206 = vunpack.c.h.b16 %v121
  %v207 = vunpack.c.l.b16 %v122
  %v208 = vunpack.c.h.b16 %v122
  %v209 = vunpack.c.l.b16 %v123
  %v210 = vunpack.c.h.b16 %v123
  %v211 = vunpack.c.l.b16 %v124
  %v212 = vunpack.c.h.b16 %v124
  %v213 = vunpack.c.l.b16 %v125
  %v214 = vunpack.c.h.b16 %v125
  %v215 = vunpack.c.l.b16 %v126
  %v216 = vunpack.c.h.b16 %v126
  %v217 = vunpack.c.l.b16 %v127
  %v218 = vunpack.c.h.b16 %v127
  %v219 = vunpack.c.l.b16 %v128
  %v220 = vunpack.c.h.b16 %v128
  %v221 = vunpack.c.l.b16 %v129
  %v222 = vunpack.c.h.b16 %v129
  %v223 = vunpack.c.l.b16 %v130
  %v224 = vunpack.c.h.b16 %v130
  %v225 = vunpack.c.l.b16 %v131
  %v226 = vunpack.c.h.b16 %v131
  %v227 = vunpack.c.l.b16 %v132
  %v228 = vunpack.c.h.b16 %v132
  %v229 = vunpack.c.l.b16 %v133
  %v230 = vunpack.c.h.b16 %v133
  %v231 = vunpack.c.l.b16 %v134
  %v232 = vunpack.c.h.b16 %v134
  %v233 = vunpack.c.l.b16 %v135
  %v234 = vunpack.c.h.b16 %v135
  %v235 = vunpack.c.l.b16 %v136
  %v236 = vunpack.c.h.b16 %v136
  %v237 = vunpack.c.l.b16 %v137
  %v238 = vunpack.c.h.b16 %v137
  %v239 = vunpack.c.l.b16 %v138
  %v240 = vunpack.c.h.b16 %v138
  %v241 = vunpack.c.l.b16 %v139
  %v242 = vunpack.c.h.b16 %v139
  %v243 = vunpack.c.l.b16 %v140
  %v244 = vunpack.c.h.b16 %v140
  %v245 = vunpack.c.l.b16 %v141
  %v246 = vunpack.c.h.b16 %v141
  %v247 = vunpack.c.l.b16 %v142
  %v248 = vunpack.c.h.b16 %v142
  %v249 = vunpack.c.l.b16 %v143
  %v250 = vunpack.c.h.b16 %v143
  %v251 = vunpack.c.l.b16 %v144
  %v252 = vunpack.c.h.b16 %v144
  %v253 = vpack.c.b16 %v191, %v189
  %v254 = vpack.c.b16 %v192, %v190
  %v255 = vpack.c.b16 %v195, %v193
  %v256 = vpack.c.b16 %v196, %v194
  %v257 = vpack.c.b16 %v199, %v197
  %v258 = vpack.c.b16 %v200, %v198
  %v259 = vpack.c.b16 %v203, %v201
  %v260 = vpack.c.b16 %v204, %v202
  %v261 = vpack.c.b16 %v207, %v205
  %v262 = vpack.c.b16 %v208, %v206
  %v263 = vpack.c.b16 %v211, %v209
  %v264 = vpack.c.b16 %v212, %v210
  %v265 = vpack.c.b16 %v215, %v213
  %v266 = vpack.c.b16 %v216, %v214
  %v267 = vpack.c.b16 %v219, %v217
  %v268 = vpack.c.b16 %v220, %v218
  %v269 = vpack.c.b16 %v223, %v221
  %v270 = vpack.c.b16 %v224, %v222
  %v271 = vpack.c.b16 %v227, %v225
  %v272 = vpack.c.b16 %v228, %v226
  %v273 = vpack.c.b16 %v231, %v229
  %v274 = vpack.c.b16 %v232, %v230
  %v275 = vpack.c.b16 %v235, %v233
  %v276 = vpack.c.b16 %v236, %v234
  %v277 = vpack.c.b16 %v239, %v237
  %v278 = vpack.c.b16 %v240, %v238
  %v279 = vpack.c.b16 %v243, %v241
  %v280 = vpack.c.b16 %v244, %v242
  %v281 = vpack.c.b16 %v247, %v245
  %v282 = vpack.c.b16 %v248, %v246
  %v283 = vpack.c.b16 %v251, %v249
  %v284 = vpack.c.b16 %v252, %v250
  %317 = vmatprep.subr.bf16.mxu0 %v254
  %318 = vmatpush1.bf16.msra.mxu0 %v253
  %319 = vmatprep.subr.bf16.mxu0 %v256
  %320 = vmatpush1.bf16.msra.mxu0 %v255
  %321 = vmatprep.subr.bf16.mxu0 %v258
  %322 = vmatpush1.bf16.msra.mxu0 %v257
  %323 = vmatprep.subr.bf16.mxu0 %v260
  %324 = vmatpush1.bf16.msra.mxu0 %v259
  %325 = vmatprep.subr.bf16.mxu0 %v262
  %326 = vmatpush1.bf16.msra.mxu0 %v261
  %327 = vmatprep.subr.bf16.mxu0 %v264
  %328 = vmatpush1.bf16.msra.mxu0 %v263
  %329 = vmatprep.subr.bf16.mxu0 %v266
  %330 = vmatpush1.bf16.msra.mxu0 %v265
  %331 = vmatprep.subr.bf16.mxu0 %v268
  %332 = vmatpush1.bf16.msra.mxu0 %v267
  %333 = vmatprep.subr.bf16.mxu0 %v270
  %334 = vmatpush1.bf16.msra.mxu0 %v269
  %335 = vmatprep.subr.bf16.mxu0 %v272
  %336 = vmatpush1.bf16.msra.mxu0 %v271
  %337 = vmatprep.subr.bf16.mxu0 %v274
  %338 = vmatpush1.bf16.msra.mxu0 %v273
  %339 = vmatprep.subr.bf16.mxu0 %v276
  %340 = vmatpush1.bf16.msra.mxu0 %v275
  %341 = vmatprep.subr.bf16.mxu0 %v278
  %342 = vmatpush1.bf16.msra.mxu0 %v277
  %343 = vmatprep.subr.bf16.mxu0 %v280
  %344 = vmatpush1.bf16.msra.mxu0 %v279
  %345 = vmatprep.subr.bf16.mxu0 %v282
  %346 = vmatpush1.bf16.msra.mxu0 %v281
  %347 = vmatprep.subr.bf16.mxu0 %v284
  %348 = vmatpush1.bf16.msra.mxu0 %v283
  %349 = vmatprep.mubr.bf16.mxu0 %v112
  %350 = vmatmul.mubr.bf16.gmra.mrb[0].mxu0 %v111
  %v351 = vpop.f32.mrb[0].mxu0
  %v352 = vadd.f32 %v150, %v351
  %v353 = vpop.f32.mrb[0].mxu0
  %v354 = vadd.f32 %v154, %v353
  %v355 = vpop.f32.mrb[0].mxu0
  %v356 = vpop.f32.mrb[0].mxu0
  %357 = vdwg.mxu0
  %v358 = vmax.f32 %v352, 0.0
  %v359 = vmax.f32 %v354, 0.0
  %v360 = vld [vmem:[%s5] sm:$0x3]
  %v362 = vlaneseq
  %v363 = vshrl.u32 %v362, 7
  %v364 = vsub.s32 0, %v363
  %v365 = vrot.slane %v360, %v364
  %v366 = vlaneseq
  %v367 = vshrl.u32 %v366, 7
  %v368 = vsub.s32 1, %v367
  %v369 = vrot.slane %v360, %v368
  %v372 = vmul.f32 %v358, %v365
  %v373 = vmul.f32 %v359, %v369
  %v374 = vadd.f32 %v372, %v373
  %375 = vadd.xlane.f32.xlu0 %v374
  %v376 = vpop.xlane.xlu0 %375
  %v378 = vlaneseq
  %v379 = vand.u32 %v378, 127
  %v380 = vlaneseq
  %v381 = vshrl.u32 %v380, 7
  %v382 = vsub.s32 %v379, %v381
  %v383 = vrot.slane %v376, %v382
  %vm385 = vcmask 57344
  %386 = vst.msk [vmem:[%s6] sm:$0x1] %vm385, %v383
  // Predicated region
  $region26: #{critic_forward.1} parent=0 // pred_check
    _
  $region27: #{critic_forward.1} parent=0 // pred_check_branch
    %388 = sbr.rel (0) target = $region29
  $region28: #{critic_forward.1} parent=0 // pred_region
    _
  $region29: #{critic_forward.1} parent=0 // pred_fallthru
    _
  // Predicated region
  $region30: #{critic_forward.1} parent=0 // pred_check
    _
  $region31: #{critic_forward.1} parent=0 // pred_check_branch
    %390 = sbr.rel (0) target = $region33
  $region32: #{critic_forward.1} parent=0 // pred_region
    _
  $region33: #{critic_forward.1} parent=0 // pred_fallthru
    _

// kernel: critic_forward.1
$region0: #{critic_forward.1}
  #allocation0 [shape = 'u32[]', space=smem, size = 0x4, offset = 0x4, fixed_abs, tag = 'smem constant byte address 0x4 - core index']
  #allocation1 [shape = 'u32[144,128]{1,0:T(1,128)}', space=vmem, size = 0x12000, scoped, tag = 'internal scratch']
  %s0 = inlined_call_operand.vmem [shape: bf16[8,17], index: 0, kind: input, shape index: {}]
  %s1 = inlined_call_operand.vmem [shape: bf16[17,256], index: 1, kind: input, shape index: {}]
  %s2 = inlined_call_operand.vmem [shape: f32[1,256], index: 2, kind: input, shape index: {}]
  %s3 = inlined_call_operand.vmem [shape: bf16[256,256], index: 3, kind: input, shape index: {}]
  %s4 = inlined_call_operand.vmem [shape: f32[1,256], index: 4, kind: input, shape index: {}]
  %s5 = inlined_call_operand.vmem [shape: f32[1,256], index: 5, kind: input, shape index: {}]
  %s6 = inlined_call_operand.vmem [shape: f32[1,8], index: 6, kind: output, shape index: {}]
  %s7 = sld [smem:[#allocation0]]
  $region34: #{critic_forward.1} parent=0
    _
  %s9 = ssub.s32 1, %s7
  %s10 = scalar_select 0, %s9, %s7
  // Predicated region
  $region2: #{critic_forward.1} parent=0 // pred_check
    _
  $region3: #{critic_forward.1} parent=0 // pred_check_branch
    %12 = sbr.rel (0) target = $region5
  $region4: #{critic_forward.1} parent=0 // pred_region
    _
  $region5: #{critic_forward.1} parent=0 // pred_fallthru
    _
  // Predicated region
  $region6: #{critic_forward.1} parent=0 // pred_check
    _
  $region7: #{critic_forward.1} parent=0 // pred_check_branch
    %14 = sbr.rel (0) target = $region9
  $region8: #{critic_forward.1} parent=0 // pred_region
    _
  $region9: #{critic_forward.1} parent=0 // pred_fallthru
    _
  // Predicated region
  $region10: #{critic_forward.1} parent=0 // pred_check
    _
  $region11: #{critic_forward.1} parent=0 // pred_check_branch
    %16 = sbr.rel (0) target = $region13
  $region12: #{critic_forward.1} parent=0 // pred_region
    _
  $region13: #{critic_forward.1} parent=0 // pred_fallthru
    _
  // Predicated region
  $region14: #{critic_forward.1} parent=0 // pred_check
    _
  $region15: #{critic_forward.1} parent=0 // pred_check_branch
    %18 = sbr.rel (0) target = $region17
  $region16: #{critic_forward.1} parent=0 // pred_region
    _
  $region17: #{critic_forward.1} parent=0 // pred_fallthru
    _
  // Predicated region
  $region18: #{critic_forward.1} parent=0 // pred_check
    _
  $region19: #{critic_forward.1} parent=0 // pred_check_branch
    %20 = sbr.rel (0) target = $region21
  $region20: #{critic_forward.1} parent=0 // pred_region
    _
  $region21: #{critic_forward.1} parent=0 // pred_fallthru
    _
  // Predicated region
  $region22: #{critic_forward.1} parent=0 // pred_check
    _
  $region23: #{critic_forward.1} parent=0 // pred_check_branch
    %22 = sbr.rel (0) target = $region25
  $region24: #{critic_forward.1} parent=0 // pred_region
    _
  $region25: #{critic_forward.1} parent=0 // pred_fallthru
    _
  %v24 = vld [vmem:[%s0] sm:$0xf]
  %v25 = vld [vmem:[%s1] sm:$0xff]
  %v26 = vld [vmem:[%s1 + $0x8] sm:$0xff]
  %v27 = vld [vmem:[%s1 + $0x10] sm:$0x11]
  %v28 = vld [vmem:[%s2] sm:$0x3]
  %v30 = vlaneseq
  %v31 = vshrl.u32 %v30, 7
  %v32 = vsub.s32 0, %v31
  %v33 = vrot.slane %v28, %v32
  %v34 = vlaneseq
  %v35 = vshrl.u32 %v34, 7
  %v36 = vsub.s32 1, %v35
  %v37 = vrot.slane %v28, %v36
  %v43 = vunpack.c.l.b16 %v25
  %v44 = vunpack.c.h.b16 %v25
  %v45 = vunpack.c.l.b16 %v26
  %v46 = vunpack.c.h.b16 %v26
  %v47 = vunpack.c.l.b16 %v27
  %v48 = vunpack.c.h.b16 %v27
  %v49 = vpack.c.b16 %v45, %v43
  %v50 = vpack.c.b16 %v46, %v44
  %v51 = vpack.c.b16 %v47, %v47
  %v52 = vpack.c.b16 %v48, %v48
  %vm55 = vcmask 138240
  %v57 = vsel %vm55, %v24, 0
  %vm59 = vcmask 1040384
  %v60 = vsel 0, 4294967295, 65535
  %v61 = vsel %vm59, %v60, 0
  %v63 = vand.u32 %v51, %v61
  %v66 = vand.u32 %v52, %v61
  %68 = vmatprep.subr.bf16.mxu0 %v50
  %69 = vmatpush1.bf16.msra.mxu0 %v49
  %70 = vmatprep.subr.bf16.mxu0 %v66
  %71 = vmatpush1.bf16.msra.mxu0 %v63
  %72 = vmatprep.subr.bf16.mxu0 0
  %73 = vmatpush1.bf16.msra.mxu0 0
  %74 = vmatprep.subr.bf16.mxu0 0
  %75 = vmatpush1.bf16.msra.mxu0 0
  %76 = vmatprep.subr.bf16.mxu0 0
  %77 = vmatpush1.bf16.msra.mxu0 0
  %78 = vmatprep.subr.bf16.mxu0 0
  %79 = vmatpush1.bf16.msra.mxu0 0
  %80 = vmatprep.subr.bf16.mxu0 0
  %81 = vmatpush1.bf16.msra.mxu0 0
  %82 = vmatprep.subr.bf16.mxu0 0
  %83 = vmatpush1.bf16.msra.mxu0 0
  %84 = vmatprep.subr.bf16.mxu0 0
  %85 = vmatpush1.bf16.msra.mxu0 0
  %86 = vmatprep.subr.bf16.mxu0 0
  %87 = vmatpush1.bf16.msra.mxu0 0
  %88 = vmatprep.subr.bf16.mxu0 0
  %89 = vmatpush1.bf16.msra.mxu0 0
  %90 = vmatprep.subr.bf16.mxu0 0
  %91 = vmatpush1.bf16.msra.mxu0 0
  %92 = vmatprep.subr.bf16.mxu0 0
  %93 = vmatpush1.bf16.msra.mxu0 0
  %94 = vmatprep.subr.bf16.mxu0 0
  %95 = vmatpush1.bf16.msra.mxu0 0
  %96 = vmatprep.subr.bf16.mxu0 0
  %97 = vmatpush1.bf16.msra.mxu0 0
  %98 = vmatprep.subr.bf16.mxu0 0
  %99 = vmatpush1.bf16.msra.mxu0 0
  %100 = vmatprep.mubr.bf16.mxu0 0
  %101 = vmatmul.mubr.bf16.gmra.mrb[0].mxu0 %v57
  %v102 = vpop.f32.mrb[0].mxu0
  %v103 = vadd.f32 %v33, %v102
  %v104 = vpop.f32.mrb[0].mxu0
  %v105 = vadd.f32 %v37, %v104
  %v106 = vpop.f32.mrb[0].mxu0
  %v107 = vpop.f32.mrb[0].mxu0
  %108 = vdwg.mxu0
  %v109 = vmax.f32 %v103, 0.0
  %v110 = vmax.f32 %v105, 0.0
  %v111 = vpack.c.bf16 %v109, %v109
  %v112 = vpack.c.bf16 %v110, %v110
  %v113 = vld [vmem:[%s3] sm:$0xff]
  %v114 = vld [vmem:[%s3 + $0x8] sm:$0xff]
  %v115 = vld [vmem:[%s3 + $0x10] sm:$0xff]
  %v116 = vld [vmem:[%s3 + $0x18] sm:$0xff]
  %v117 = vld [vmem:[%s3 + $0x20] sm:$0xff]
  %v118 = vld [vmem:[%s3 + $0x28] sm:$0xff]
  %v119 = vld [vmem:[%s3 + $0x30] sm:$0xff]
  %v120 = vld [vmem:[%s3 + $0x38] sm:$0xff]
  %v121 = vld [vmem:[%s3 + $0x40] sm:$0xff]
  %v122 = vld [vmem:[%s3 + $0x48] sm:$0xff]
  %v123 = vld [vmem:[%s3 + $0x50] sm:$0xff]
  %v124 = vld [vmem:[%s3 + $0x58] sm:$0xff]
  %v125 = vld [vmem:[%s3 + $0x60] sm:$0xff]
  %v126 = vld [vmem:[%s3 + $0x68] sm:$0xff]
  %v127 = vld [vmem:[%s3 + $0x70] sm:$0xff]
  %v128 = vld [vmem:[%s3 + $0x78] sm:$0xff]
  %v129 = vld [vmem:[%s3 + $0x80] sm:$0xff]
  %v130 = vld [vmem:[%s3 + $0x88] sm:$0xff]
  %v131 = vld [vmem:[%s3 + $0x90] sm:$0xff]
  %v132 = vld [vmem:[%s3 + $0x98] sm:$0xff]
  %v133 = vld [vmem:[%s3 + $0xa0] sm:$0xff]
  %v134 = vld [vmem:[%s3 + $0xa8] sm:$0xff]
  %v135 = vld [vmem:[%s3 + $0xb0] sm:$0xff]
  %v136 = vld [vmem:[%s3 + $0xb8] sm:$0xff]
  %v137 = vld [vmem:[%s3 + $0xc0] sm:$0xff]
  %v138 = vld [vmem:[%s3 + $0xc8] sm:$0xff]
  %v139 = vld [vmem:[%s3 + $0xd0] sm:$0xff]
  %v140 = vld [vmem:[%s3 + $0xd8] sm:$0xff]
  %v141 = vld [vmem:[%s3 + $0xe0] sm:$0xff]
  %v142 = vld [vmem:[%s3 + $0xe8] sm:$0xff]
  %v143 = vld [vmem:[%s3 + $0xf0] sm:$0xff]
  %v144 = vld [vmem:[%s3 + $0xf8] sm:$0xff]
  %v145 = vld [vmem:[%s4] sm:$0x3]
  %v147 = vlaneseq
  %v148 = vshrl.u32 %v147, 7
  %v149 = vsub.s32 0, %v148
  %v150 = vrot.slane %v145, %v149
  %v151 = vlaneseq
  %v152 = vshrl.u32 %v151, 7
  %v153 = vsub.s32 1, %v152
  %v154 = vrot.slane %v145, %v153
  %v189 = vunpack.c.l.b16 %v113
  %v190 = vunpack.c.h.b16 %v113
  %v191 = vunpack.c.l.b16 %v114
  %v192 = vunpack.c.h.b16 %v114
  %v193 = vunpack.c.l.b16 %v115
  %v194 = vunpack.c.h.b16 %v115
  %v195 = vunpack.c.l.b16 %v116
  %v196 = vunpack.c.h.b16 %v116
  %v197 = vunpack.c.l.b16 %v117
  %v198 = vunpack.c.h.b16 %v117
  %v199 = vunpack.c.l.b16 %v118
  %v200 = vunpack.c.h.b16 %v118
  %v201 = vunpack.c.l.b16 %v119
  %v202 = vunpack.c.h.b16 %v119
  %v203 = vunpack.c.l.b16 %v120
  %v204 = vunpack.c.h.b16 %v120
  %v205 = vunpack.c.l.b16 %v121
  %v206 = vunpack.c.h.b16 %v121
  %v207 = vunpack.c.l.b16 %v122
  %v208 = vunpack.c.h.b16 %v122
  %v209 = vunpack.c.l.b16 %v123
  %v210 = vunpack.c.h.b16 %v123
  %v211 = vunpack.c.l.b16 %v124
  %v212 = vunpack.c.h.b16 %v124
  %v213 = vunpack.c.l.b16 %v125
  %v214 = vunpack.c.h.b16 %v125
  %v215 = vunpack.c.l.b16 %v126
  %v216 = vunpack.c.h.b16 %v126
  %v217 = vunpack.c.l.b16 %v127
  %v218 = vunpack.c.h.b16 %v127
  %v219 = vunpack.c.l.b16 %v128
  %v220 = vunpack.c.h.b16 %v128
  %v221 = vunpack.c.l.b16 %v129
  %v222 = vunpack.c.h.b16 %v129
  %v223 = vunpack.c.l.b16 %v130
  %v224 = vunpack.c.h.b16 %v130
  %v225 = vunpack.c.l.b16 %v131
  %v226 = vunpack.c.h.b16 %v131
  %v227 = vunpack.c.l.b16 %v132
  %v228 = vunpack.c.h.b16 %v132
  %v229 = vunpack.c.l.b16 %v133
  %v230 = vunpack.c.h.b16 %v133
  %v231 = vunpack.c.l.b16 %v134
  %v232 = vunpack.c.h.b16 %v134
  %v233 = vunpack.c.l.b16 %v135
  %v234 = vunpack.c.h.b16 %v135
  %v235 = vunpack.c.l.b16 %v136
  %v236 = vunpack.c.h.b16 %v136
  %v237 = vunpack.c.l.b16 %v137
  %v238 = vunpack.c.h.b16 %v137
  %v239 = vunpack.c.l.b16 %v138
  %v240 = vunpack.c.h.b16 %v138
  %v241 = vunpack.c.l.b16 %v139
  %v242 = vunpack.c.h.b16 %v139
  %v243 = vunpack.c.l.b16 %v140
  %v244 = vunpack.c.h.b16 %v140
  %v245 = vunpack.c.l.b16 %v141
  %v246 = vunpack.c.h.b16 %v141
  %v247 = vunpack.c.l.b16 %v142
  %v248 = vunpack.c.h.b16 %v142
  %v249 = vunpack.c.l.b16 %v143
  %v250 = vunpack.c.h.b16 %v143
  %v251 = vunpack.c.l.b16 %v144
  %v252 = vunpack.c.h.b16 %v144
  %v253 = vpack.c.b16 %v191, %v189
  %v254 = vpack.c.b16 %v192, %v190
  %v255 = vpack.c.b16 %v195, %v193
  %v256 = vpack.c.b16 %v196, %v194
  %v257 = vpack.c.b16 %v199, %v197
  %v258 = vpack.c.b16 %v200, %v198
  %v259 = vpack.c.b16 %v203, %v201
  %v260 = vpack.c.b16 %v204, %v202
  %v261 = vpack.c.b16 %v207, %v205
  %v262 = vpack.c.b16 %v208, %v206
  %v263 = vpack.c.b16 %v211, %v209
  %v264 = vpack.c.b16 %v212, %v210
  %v265 = vpack.c.b16 %v215, %v213
  %v266 = vpack.c.b16 %v216, %v214
  %v267 = vpack.c.b16 %v219, %v217
  %v268 = vpack.c.b16 %v220, %v218
  %v269 = vpack.c.b16 %v223, %v221
  %v270 = vpack.c.b16 %v224, %v222
  %v271 = vpack.c.b16 %v227, %v225
  %v272 = vpack.c.b16 %v228, %v226
  %v273 = vpack.c.b16 %v231, %v229
  %v274 = vpack.c.b16 %v232, %v230
  %v275 = vpack.c.b16 %v235, %v233
  %v276 = vpack.c.b16 %v236, %v234
  %v277 = vpack.c.b16 %v239, %v237
  %v278 = vpack.c.b16 %v240, %v238
  %v279 = vpack.c.b16 %v243, %v241
  %v280 = vpack.c.b16 %v244, %v242
  %v281 = vpack.c.b16 %v247, %v245
  %v282 = vpack.c.b16 %v248, %v246
  %v283 = vpack.c.b16 %v251, %v249
  %v284 = vpack.c.b16 %v252, %v250
  %317 = vmatprep.subr.bf16.mxu0 %v254
  %318 = vmatpush1.bf16.msra.mxu0 %v253
  %319 = vmatprep.subr.bf16.mxu0 %v256
  %320 = vmatpush1.bf16.msra.mxu0 %v255
  %321 = vmatprep.subr.bf16.mxu0 %v258
  %322 = vmatpush1.bf16.msra.mxu0 %v257
  %323 = vmatprep.subr.bf16.mxu0 %v260
  %324 = vmatpush1.bf16.msra.mxu0 %v259
  %325 = vmatprep.subr.bf16.mxu0 %v262
  %326 = vmatpush1.bf16.msra.mxu0 %v261
  %327 = vmatprep.subr.bf16.mxu0 %v264
  %328 = vmatpush1.bf16.msra.mxu0 %v263
  %329 = vmatprep.subr.bf16.mxu0 %v266
  %330 = vmatpush1.bf16.msra.mxu0 %v265
  %331 = vmatprep.subr.bf16.mxu0 %v268
  %332 = vmatpush1.bf16.msra.mxu0 %v267
  %333 = vmatprep.subr.bf16.mxu0 %v270
  %334 = vmatpush1.bf16.msra.mxu0 %v269
  %335 = vmatprep.subr.bf16.mxu0 %v272
  %336 = vmatpush1.bf16.msra.mxu0 %v271
  %337 = vmatprep.subr.bf16.mxu0 %v274
  %338 = vmatpush1.bf16.msra.mxu0 %v273
  %339 = vmatprep.subr.bf16.mxu0 %v276
  %340 = vmatpush1.bf16.msra.mxu0 %v275
  %341 = vmatprep.subr.bf16.mxu0 %v278
  %342 = vmatpush1.bf16.msra.mxu0 %v277
  %343 = vmatprep.subr.bf16.mxu0 %v280
  %344 = vmatpush1.bf16.msra.mxu0 %v279
  %345 = vmatprep.subr.bf16.mxu0 %v282
  %346 = vmatpush1.bf16.msra.mxu0 %v281
  %347 = vmatprep.subr.bf16.mxu0 %v284
  %348 = vmatpush1.bf16.msra.mxu0 %v283
  %349 = vmatprep.mubr.bf16.mxu0 %v112
  %350 = vmatmul.mubr.bf16.gmra.mrb[0].mxu0 %v111
  %v351 = vpop.f32.mrb[0].mxu0
  %v352 = vadd.f32 %v150, %v351
  %v353 = vpop.f32.mrb[0].mxu0
  %v354 = vadd.f32 %v154, %v353
  %v355 = vpop.f32.mrb[0].mxu0
  %v356 = vpop.f32.mrb[0].mxu0
  %357 = vdwg.mxu0
  %v358 = vmax.f32 %v352, 0.0
  %v359 = vmax.f32 %v354, 0.0
  %v360 = vld [vmem:[%s5] sm:$0x3]
  %v362 = vlaneseq
  %v363 = vshrl.u32 %v362, 7
  %v364 = vsub.s32 0, %v363
  %v365 = vrot.slane %v360, %v364
  %v366 = vlaneseq
  %v367 = vshrl.u32 %v366, 7
  %v368 = vsub.s32 1, %v367
  %v369 = vrot.slane %v360, %v368
  %v372 = vmul.f32 %v358, %v365
  %v373 = vmul.f32 %v359, %v369
  %v374 = vadd.f32 %v372, %v373
  %375 = vadd.xlane.f32.xlu0 %v374
  %v376 = vpop.xlane.xlu0 %375
  %v378 = vlaneseq
  %v379 = vand.u32 %v378, 127
  %v380 = vlaneseq
  %v381 = vshrl.u32 %v380, 7
  %v382 = vsub.s32 %v379, %v381
  %v383 = vrot.slane %v376, %v382
  %vm385 = vcmask 57344
  %386 = vst.msk [vmem:[%s6] sm:$0x1] %vm385, %v383
  // Predicated region
  $region26: #{critic_forward.1} parent=0 // pred_check
    _
  $region27: #{critic_forward.1} parent=0 // pred_check_branch
    %388 = sbr.rel (0) target = $region29
  $region28: #{critic_forward.1} parent=0 // pred_region
    _
  $region29: #{critic_forward.1} parent=0 // pred_fallthru
    _
  // Predicated region
  $region30: #{critic_forward.1} parent=0 // pred_check
    _
  $region31: #{critic_forward.1} parent=0 // pred_check_branch
    %390 = sbr.rel (0) target = $region33
  $region32: #{critic_forward.1} parent=0 // pred_region
    _
  $region33: #{critic_forward.1} parent=0 // pred_fallthru
    _

</llo_original>
